<compile_context>
chip_gen: v5e
topology: v5e:2x2
jax: 0.10.0
libtpu: 0.0.40
codegen_flags: <defaults>
</compile_context>

<pallas_src>
import jax
import jax.numpy as jnp
from jax.experimental import pallas as pl
from jax.experimental.pallas import tpu as pltpu

EPS = 1e-5
H1 = 128          # fc1 width
H2 = 64           # fc2 width (padded to 128 lanes inside the kernel path)
LANES = 128


def snv_kernel(x_ref, w1_ref, w2t_ref, vecs_ref, b3_ref, o_ref):
    # vecs rows: 0=b1 1=g1 2=be1 3=b2 4=g2 5=be2 6=w3_row (all zero-padded to 128 lanes)
    x = x_ref[...]                                   # (B, D)
    inv_b = 1.0 / x.shape[0]

    b1 = vecs_ref[0:1, :]
    g1 = vecs_ref[1:2, :]
    be1 = vecs_ref[2:3, :]
    b2 = vecs_ref[3:4, :]
    g2 = vecs_ref[4:5, :]
    be2 = vecs_ref[5:6, :]
    w3_row = vecs_ref[6:7, :]                        # (1, 128), zeros past H2

    # ---- fc1 -> relu, single-pass BN1 statistics ----
    h1 = jnp.dot(x, w1_ref[...], preferred_element_type=jnp.float32) + b1
    h1 = jnp.maximum(h1, 0.0)                        # (B, 128)
    m1 = jnp.sum(h1, axis=0, keepdims=True) * inv_b
    v1 = jnp.maximum(jnp.sum(h1 * h1, axis=0, keepdims=True) * inv_b - m1 * m1, 0.0)
    s1 = g1 * jax.lax.rsqrt(v1 + EPS)                # (1, 128)
    t1 = be1 - m1 * s1                               # (1, 128)

    # ---- BN1 folded into fc2 (no (B,128) normalize pass) ----
    # w2 is passed transposed: w2t[out, in], pad out-rows are zero.
    w2t = w2t_ref[...]                               # (128, 128)
    w2t_eff = w2t * s1                               # scale input-feature lanes
    b2_eff = jax.lax.dot_general(
        t1, w2t, (((1,), (1,)), ((), ())),
        preferred_element_type=jnp.float32) + b2     # (1, 128), pad lanes 0
    h2 = jax.lax.dot_general(
        h1, w2t_eff, (((1,), (1,)), ((), ())),
        preferred_element_type=jnp.float32) + b2_eff  # (B, 128)
    h2 = jnp.maximum(h2, 0.0)                        # pad lanes stay exactly 0

    # ---- single-pass BN2 statistics, folded into fc3 ----
    m2 = jnp.sum(h2, axis=0, keepdims=True) * inv_b
    v2 = jnp.maximum(jnp.sum(h2 * h2, axis=0, keepdims=True) * inv_b - m2 * m2, 0.0)
    s2 = g2 * jax.lax.rsqrt(v2 + EPS)                # pad lanes: g2 = 0 -> s2 = 0
    t2 = be2 - m2 * s2                               # pad lanes 0

    w3_eff = w3_row * s2                             # (1, 128)
    c = jnp.sum(w3_row * t2) + b3_ref[0]             # scalar: t2-offset + fc3 bias

    # ---- fc3 as (1,128) x (B,128)^T -> lane-dense (1, B) output ----
    logits = jax.lax.dot_general(
        w3_eff, h2, (((1,), (1,)), ((), ())),
        preferred_element_type=jnp.float32)          # (1, B)
    o_ref[...] = logits + c


def _pad_lanes(v, lanes=LANES):
    """(1, F) -> (1, lanes), zero padded."""
    out = jnp.zeros((1, lanes), jnp.float32)
    return out.at[:, : v.shape[1]].set(v)


def snv_classifier_forward(x, params):
    B = x.shape[0]
    assert B % 8 == 0, "batch must be a multiple of 8 (sublane tile); 128 preferred"
    # B % 128 == 0 additionally makes the (1, B) output store fully lane-dense.

    # Pack / pad parameters (done in the wrapper; real shapes kept in `params`).
    w1 = params["w1"]                                                    # (D, 128)
    # fc2 weight passed TRANSPOSED (out, in) so BN1 can be folded in with a
    # lane-aligned broadcast (no in-kernel transpose); pad out-rows with zeros.
    w2t = jnp.zeros((LANES, H1), jnp.float32).at[:H2, :].set(params["w2"].T)
    w3_row = jnp.zeros((1, LANES), jnp.float32).at[:, :H2].set(params["w3"].T)

    vecs = jnp.concatenate(
        [
            _pad_lanes(params["b1"]), _pad_lanes(params["g1"]), _pad_lanes(params["be1"]),
            _pad_lanes(params["b2"]), _pad_lanes(params["g2"]), _pad_lanes(params["be2"]),
            w3_row,
        ],
        axis=0,
    )                                                                    # (7, 128)
    b3 = params["b3"].reshape((1,)).astype(jnp.float32)                  # SMEM scalar

    # VMEM budget: ~a handful of (B,128) f32 slabs (x lane-padded, h1, h2, h*h
    # temporaries) + weights, with headroom.  Keeps us honest on v7x (64 MiB).
    slab = B * LANES * 4
    vmem_limit = 8 * slab + 3 * H1 * LANES * 4 + (1 << 20)
    vmem_limit = min(max(vmem_limit, 16 * 1024 * 1024), 64 * 1024 * 1024)

    vmem = pl.BlockSpec(memory_space=pltpu.MemorySpace.VMEM)
    smem = pl.BlockSpec(memory_space=pltpu.MemorySpace.SMEM)

    out = pl.pallas_call(
        snv_kernel,
        out_shape=jax.ShapeDtypeStruct((1, B), jnp.float32),
        in_specs=[vmem, vmem, vmem, vmem, smem],
        out_specs=vmem,
        compiler_params=pltpu.CompilerParams(vmem_limit_bytes=vmem_limit),
    )(x, w1, w2t, vecs, b3)
    return out.reshape(B, 1)


def init_params(key, input_dim):
    """Synthetic init mirroring the PyTorch module's shapes.

    fc1/fc2 weights: kaiming_uniform (relu gain); biases: default nn.Linear
    uniform(-1/sqrt(fan_in), +1/sqrt(fan_in)); BN gamma=1, beta=0.
    Linear weights are stored transposed: (in_features, out_features).
    """
    ks = jax.random.split(key, 6)

    def kaiming_uniform(k, fan_in, fan_out):
        bound = jnp.sqrt(2.0) * jnp.sqrt(3.0 / fan_in)
        return jax.random.uniform(k, (fan_in, fan_out), jnp.float32, -bound, bound)

    def bias_uniform(k, fan_in, fan_out):
        bound = 1.0 / jnp.sqrt(fan_in)
        return jax.random.uniform(k, (1, fan_out), jnp.float32, -bound, bound)

    return {
        "w1": kaiming_uniform(ks[0], input_dim, H1),
        "b1": bias_uniform(ks[1], input_dim, H1),
        "g1": jnp.ones((1, H1), jnp.float32),
        "be1": jnp.zeros((1, H1), jnp.float32),
        "w2": kaiming_uniform(ks[2], H1, H2),
        "b2": bias_uniform(ks[3], H1, H2),
        "g2": jnp.ones((1, H2), jnp.float32),
        "be2": jnp.zeros((1, H2), jnp.float32),
        "w3": jax.random.uniform(ks[4], (H2, 1), jnp.float32,
                                 -1.0 / jnp.sqrt(float(H2)), 1.0 / jnp.sqrt(float(H2))),
        "b3": jax.random.uniform(ks[5], (1, 1), jnp.float32,
                                 -1.0 / jnp.sqrt(float(H2)), 1.0 / jnp.sqrt(float(H2))),
    }


def reference_forward(x, p):
    """Pure-JAX reference with PyTorch training-mode BN (two-pass variance)."""
    h1 = jnp.maximum(x @ p["w1"] + p["b1"], 0.0)
    m1 = jnp.mean(h1, axis=0, keepdims=True)
    v1 = jnp.mean((h1 - m1) ** 2, axis=0, keepdims=True)
    h1 = (h1 - m1) / jnp.sqrt(v1 + EPS) * p["g1"] + p["be1"]
    h2 = jnp.maximum(h1 @ p["w2"] + p["b2"], 0.0)
    m2 = jnp.mean(h2, axis=0, keepdims=True)
    v2 = jnp.mean((h2 - m2) ** 2, axis=0, keepdims=True)
    h2 = (h2 - m2) / jnp.sqrt(v2 + EPS) * p["g2"] + p["be2"]
    return h2 @ p["w3"] + p["b3"]


if __name__ == "__main__":
    key = jax.random.PRNGKey(0)
    k_x, k_p = jax.random.split(key)

    # B = 128 keeps the example small while making the (1, B) output fully
    # lane-dense and giving the MXU a full sublane tile of rows.
    B, INPUT_DIM = 128, 32
    x = jax.random.normal(k_x, (B, INPUT_DIM), jnp.float32)
    params = init_params(k_p, INPUT_DIM)

    out = snv_classifier_forward(x, params)
    jax.block_until_ready(out)

    ref = reference_forward(x, params)
    assert out.shape == (B, 1)
    assert jnp.allclose(out, ref, atol=1e-4, rtol=1e-4), float(jnp.max(jnp.abs(out - ref)))

    print("KERNEL_OK")
</pallas_src>

<mosaic_0001>
module attributes {stable_mosaic.version = 11 : i64} {
  func.func @snv_kernel(%arg0: memref<128x32xf32, #tpu.memory_space<vmem>>, %arg1: memref<32x128xf32, #tpu.memory_space<vmem>>, %arg2: memref<128x128xf32, #tpu.memory_space<vmem>>, %arg3: memref<7x128xf32, #tpu.memory_space<vmem>>, %arg4: memref<1xf32, #tpu.memory_space<smem>>, %arg5: memref<1x128xf32, #tpu.memory_space<vmem>>) attributes {dimension_semantics = [], scalar_prefetch = 0 : i64, scratch_operands = 0 : i64, tpu.core_type = #tpu.core_type<tc>} {
    %c0 = arith.constant 0 : index
    %c0_0 = arith.constant 0 : index
    %0 = vector.load %arg0[%c0, %c0_0] : memref<128x32xf32, #tpu.memory_space<vmem>>, vector<128x32xf32>
    %c0_1 = arith.constant 0 : index
    %c0_2 = arith.constant 0 : index
    %1 = vector.load %arg3[%c0_1, %c0_2] : memref<7x128xf32, #tpu.memory_space<vmem>>, vector<1x128xf32>
    %c1 = arith.constant 1 : index
    %c0_3 = arith.constant 0 : index
    %2 = vector.load %arg3[%c1, %c0_3] : memref<7x128xf32, #tpu.memory_space<vmem>>, vector<1x128xf32>
    %c2 = arith.constant 2 : index
    %c0_4 = arith.constant 0 : index
    %3 = vector.load %arg3[%c2, %c0_4] : memref<7x128xf32, #tpu.memory_space<vmem>>, vector<1x128xf32>
    %c3 = arith.constant 3 : index
    %c0_5 = arith.constant 0 : index
    %4 = vector.load %arg3[%c3, %c0_5] : memref<7x128xf32, #tpu.memory_space<vmem>>, vector<1x128xf32>
    %c4 = arith.constant 4 : index
    %c0_6 = arith.constant 0 : index
    %5 = vector.load %arg3[%c4, %c0_6] : memref<7x128xf32, #tpu.memory_space<vmem>>, vector<1x128xf32>
    %c5 = arith.constant 5 : index
    %c0_7 = arith.constant 0 : index
    %6 = vector.load %arg3[%c5, %c0_7] : memref<7x128xf32, #tpu.memory_space<vmem>>, vector<1x128xf32>
    %c6 = arith.constant 6 : index
    %c0_8 = arith.constant 0 : index
    %7 = vector.load %arg3[%c6, %c0_8] : memref<7x128xf32, #tpu.memory_space<vmem>>, vector<1x128xf32>
    %c0_9 = arith.constant 0 : index
    %c0_10 = arith.constant 0 : index
    %8 = vector.load %arg1[%c0_9, %c0_10] : memref<32x128xf32, #tpu.memory_space<vmem>>, vector<32x128xf32>
    %cst = arith.constant dense<0.000000e+00> : vector<128x128xf32>
    %9 = tpu.matmul %0, %8, %cst {dimension_numbers = #tpu.dot_dimension_numbers<[1], [0], [0], [1], [0, 0, 1, 1], [], []>} : vector<128x32xf32>, vector<32x128xf32>, vector<128x128xf32> -> vector<128x128xf32>
    %10 = vector.broadcast %1 : vector<1x128xf32> to vector<128x128xf32>
    %11 = arith.addf %9, %10 : vector<128x128xf32>
    %cst_11 = arith.constant 0.000000e+00 : f32
    %12 = vector.broadcast %cst_11 : f32 to vector<128x128xf32>
    %13 = arith.maximumf %11, %12 : vector<128x128xf32>
    %cst_12 = arith.constant dense<0.000000e+00> : vector<128xf32>
    %14 = vector.multi_reduction <add>, %13, %cst_12 [0] : vector<128x128xf32> to vector<128xf32>
    %15 = vector.shape_cast %14 : vector<128xf32> to vector<1x128xf32>
    %cst_13 = arith.constant 7.812500e-03 : f32
    %16 = vector.broadcast %cst_13 : f32 to vector<1x128xf32>
    %17 = arith.mulf %15, %16 : vector<1x128xf32>
    %18 = arith.mulf %13, %13 : vector<128x128xf32>
    %cst_14 = arith.constant dense<0.000000e+00> : vector<128xf32>
    %19 = vector.multi_reduction <add>, %18, %cst_14 [0] : vector<128x128xf32> to vector<128xf32>
    %20 = vector.shape_cast %19 : vector<128xf32> to vector<1x128xf32>
    %cst_15 = arith.constant 7.812500e-03 : f32
    %21 = vector.broadcast %cst_15 : f32 to vector<1x128xf32>
    %22 = arith.mulf %20, %21 : vector<1x128xf32>
    %23 = arith.mulf %17, %17 : vector<1x128xf32>
    %24 = arith.subf %22, %23 : vector<1x128xf32>
    %cst_16 = arith.constant 0.000000e+00 : f32
    %25 = vector.broadcast %cst_16 : f32 to vector<1x128xf32>
    %26 = arith.maximumf %24, %25 : vector<1x128xf32>
    %cst_17 = arith.constant 9.99999974E-6 : f32
    %27 = vector.broadcast %cst_17 : f32 to vector<1x128xf32>
    %28 = arith.addf %26, %27 : vector<1x128xf32>
    %29 = math.rsqrt %28 : vector<1x128xf32>
    %30 = arith.mulf %2, %29 : vector<1x128xf32>
    %31 = arith.mulf %17, %30 : vector<1x128xf32>
    %32 = arith.subf %3, %31 : vector<1x128xf32>
    %c0_18 = arith.constant 0 : index
    %c0_19 = arith.constant 0 : index
    %33 = vector.load %arg2[%c0_18, %c0_19] : memref<128x128xf32, #tpu.memory_space<vmem>>, vector<128x128xf32>
    %34 = vector.broadcast %30 : vector<1x128xf32> to vector<128x128xf32>
    %35 = arith.mulf %33, %34 : vector<128x128xf32>
    %cst_20 = arith.constant dense<0.000000e+00> : vector<1x128xf32>
    %36 = tpu.matmul %32, %33, %cst_20 {dimension_numbers = #tpu.dot_dimension_numbers<[1], [1], [0], [0], [0, 0, 1, 0], [], []>} : vector<1x128xf32>, vector<128x128xf32>, vector<1x128xf32> -> vector<1x128xf32>
    %37 = arith.addf %36, %4 : vector<1x128xf32>
    %cst_21 = arith.constant dense<0.000000e+00> : vector<128x128xf32>
    %38 = tpu.matmul %13, %35, %cst_21 {dimension_numbers = #tpu.dot_dimension_numbers<[1], [1], [0], [0], [0, 0, 1, 0], [], []>} : vector<128x128xf32>, vector<128x128xf32>, vector<128x128xf32> -> vector<128x128xf32>
    %39 = vector.broadcast %37 : vector<1x128xf32> to vector<128x128xf32>
    %40 = arith.addf %38, %39 : vector<128x128xf32>
    %cst_22 = arith.constant 0.000000e+00 : f32
    %41 = vector.broadcast %cst_22 : f32 to vector<128x128xf32>
    %42 = arith.maximumf %40, %41 : vector<128x128xf32>
    %cst_23 = arith.constant dense<0.000000e+00> : vector<128xf32>
    %43 = vector.multi_reduction <add>, %42, %cst_23 [0] : vector<128x128xf32> to vector<128xf32>
    %44 = vector.shape_cast %43 : vector<128xf32> to vector<1x128xf32>
    %cst_24 = arith.constant 7.812500e-03 : f32
    %45 = vector.broadcast %cst_24 : f32 to vector<1x128xf32>
    %46 = arith.mulf %44, %45 : vector<1x128xf32>
    %47 = arith.mulf %42, %42 : vector<128x128xf32>
    %cst_25 = arith.constant dense<0.000000e+00> : vector<128xf32>
    %48 = vector.multi_reduction <add>, %47, %cst_25 [0] : vector<128x128xf32> to vector<128xf32>
    %49 = vector.shape_cast %48 : vector<128xf32> to vector<1x128xf32>
    %cst_26 = arith.constant 7.812500e-03 : f32
    %50 = vector.broadcast %cst_26 : f32 to vector<1x128xf32>
    %51 = arith.mulf %49, %50 : vector<1x128xf32>
    %52 = arith.mulf %46, %46 : vector<1x128xf32>
    %53 = arith.subf %51, %52 : vector<1x128xf32>
    %cst_27 = arith.constant 0.000000e+00 : f32
    %54 = vector.broadcast %cst_27 : f32 to vector<1x128xf32>
    %55 = arith.maximumf %53, %54 : vector<1x128xf32>
    %cst_28 = arith.constant 9.99999974E-6 : f32
    %56 = vector.broadcast %cst_28 : f32 to vector<1x128xf32>
    %57 = arith.addf %55, %56 : vector<1x128xf32>
    %58 = math.rsqrt %57 : vector<1x128xf32>
    %59 = arith.mulf %5, %58 : vector<1x128xf32>
    %60 = arith.mulf %46, %59 : vector<1x128xf32>
    %61 = arith.subf %6, %60 : vector<1x128xf32>
    %62 = arith.mulf %7, %59 : vector<1x128xf32>
    %63 = arith.mulf %7, %61 : vector<1x128xf32>
    %64 = vector.shape_cast %63 : vector<1x128xf32> to vector<1x1x128xf32>
    %cst_29 = arith.constant dense<0.000000e+00> : vector<1xf32>
    %65 = vector.multi_reduction <add>, %64, %cst_29 [1, 2] : vector<1x1x128xf32> to vector<1xf32>
    %66 = vector.shape_cast %65 : vector<1xf32> to vector<1x1x1xf32>
    %67 = vector.extract %66[0, 0, 0] : f32 from vector<1x1x1xf32>
    %c0_30 = arith.constant 0 : index
    %68 = memref.load %arg4[%c0_30] : memref<1xf32, #tpu.memory_space<smem>>
    %69 = arith.addf %67, %68 : f32
    %cst_31 = arith.constant dense<0.000000e+00> : vector<1x128xf32>
    %70 = tpu.matmul %62, %42, %cst_31 {dimension_numbers = #tpu.dot_dimension_numbers<[1], [1], [0], [0], [0, 0, 1, 0], [], []>} : vector<1x128xf32>, vector<128x128xf32>, vector<1x128xf32> -> vector<1x128xf32>
    %71 = vector.broadcast %69 : f32 to vector<1x128xf32>
    %72 = arith.addf %70, %71 : vector<1x128xf32>
    %c0_32 = arith.constant 0 : index
    %c0_33 = arith.constant 0 : index
    %73 = vector.load %arg5[%c0_32, %c0_33] : memref<1x128xf32, #tpu.memory_space<vmem>>, vector<1x128xf32>
    tpu.vector_store %arg5[%c0_32, %c0_33], %72 {strides = array<i32>} : memref<1x128xf32, #tpu.memory_space<vmem>>, vector<1x128xf32>,
    return
  }
}

</mosaic_0001>

<llo_original>
// kernel: tpu_custom_call.1
$region0: #{tpu_custom_call.1}
  #allocation0 [shape = 'u32[]', space=smem, size = 0x4, offset = 0x4, fixed_abs, tag = 'smem constant byte address 0x4 - core index']
  #allocation1 [shape = 'u32[72,128]{1,0:T(1,128)}', space=vmem, size = 0x9000, scoped, tag = 'internal scratch']
  #allocation2 [shape = 'f32[1]{0:T(128)S(6)}', space=smem, size = 0x200, scoped, tag = 'scoped memory for tpu_custom_call.1']
  %s0 = inlined_call_operand.vmem [shape: f32[128,32], index: 0, kind: input, shape index: {}]
  %s1 = inlined_call_operand.vmem [shape: f32[32,128], index: 1, kind: input, shape index: {}]
  %s2 = inlined_call_operand.vmem [shape: f32[128,128], index: 2, kind: input, shape index: {}]
  %s3 = inlined_call_operand.hbm [shape: f32[7,128], index: 3, kind: input, shape index: {}]
  %s4 = inlined_call_operand.<no memory space> [shape: f32[1], index: 4, kind: input, shape index: {}]
  %s5 = inlined_call_operand.hbm [shape: f32[1,128], index: 5, kind: output, shape index: {}]
  %s6 = sld [smem:[#allocation0]]
  $region34: #{tpu_custom_call.1} parent=0
    _
  %s8 = ssub.s32 1, %s6
  %s9 = scalar_select 0, %s8, %s6
  %10 = sst [smem:[#allocation2]] %s4
  $region1: #{tpu_custom_call.1} parent=0
    #allocation3 [shape = 'u8[4096]{0}', space=vmem, size = 0x1000, scoped, tag = 'input window, operand 3, single buffered']
    #allocation4 [shape = 's32[1]{0}', space=sflag, size = 0x4, scoped, tag = 'scoped memory for tpu_custom_call.1']
    #allocation5 [shape = 's32[1]{0}', space=sflag, size = 0x4, scoped, tag = 'scoped memory for tpu_custom_call.1']
    #allocation6 [shape = 'u8[512]{0}', space=vmem, size = 0x400, scoped, tag = 'output window, operand 0, single buffered']
    %11 = vsyncpa [#allocation4], 0
    %12 = vsyncpa [#allocation5], 0
    // Predicated region
    $region2: #{tpu_custom_call.1} parent=1 // pred_check
      _
    $region3: #{tpu_custom_call.1} parent=1 // pred_check_branch
      %14 = sbr.rel (0) target = $region5
    $region4: #{tpu_custom_call.1} parent=1 // pred_region
      _
    $region5: #{tpu_custom_call.1} parent=1 // pred_fallthru
      _
    // Predicated region
    $region6: #{tpu_custom_call.1} parent=1 // pred_check
      _
    $region7: #{tpu_custom_call.1} parent=1 // pred_check_branch
      %16 = sbr.rel (0) target = $region9
    $region8: #{tpu_custom_call.1} parent=1 // pred_region
      _
    $region9: #{tpu_custom_call.1} parent=1 // pred_fallthru
      _
    // Predicated region
    $region10: #{tpu_custom_call.1} parent=1 // pred_check
      _
    $region11: #{tpu_custom_call.1} parent=1 // pred_check_branch
      %18 = sbr.rel (0) target = $region13
    $region12: #{tpu_custom_call.1} parent=1 // pred_region
      _
    $region13: #{tpu_custom_call.1} parent=1 // pred_fallthru
      _
    // Predicated region
    $region14: #{tpu_custom_call.1} parent=1 // pred_check
      _
    $region15: #{tpu_custom_call.1} parent=1 // pred_check_branch
      %20 = sbr.rel (0) target = $region17
    $region16: #{tpu_custom_call.1} parent=1 // pred_region
      %22 = vsyncadd [#allocation4], 0
      %s24 = sshll.u32 %s3, 4
      %s25 = int_to_ptr.hbm [resolvable:$true] %s24
      %s26 = sshll.u32 [#allocation3], 4
      %s27 = int_to_ptr.vmem [resolvable:$true] %s26
      %29 = dma.hbm_to_vmem [thread:$0]  %s25, 128, %s27, [#allocation4]
    $region17: #{tpu_custom_call.1} parent=1 // pred_fallthru
      _
    // Predicated region
    $region18: #{tpu_custom_call.1} parent=1 // pred_check
      _
    $region19: #{tpu_custom_call.1} parent=1 // pred_check_branch
      %31 = sbr.rel (0) target = $region21
    $region20: #{tpu_custom_call.1} parent=1 // pred_region
      _
    $region21: #{tpu_custom_call.1} parent=1 // pred_fallthru
      _
    // Predicated region
    $region22: #{tpu_custom_call.1} parent=1 // pred_check
      _
    $region23: #{tpu_custom_call.1} parent=1 // pred_check_branch
      %33 = sbr.rel (0) target = $region25
    $region24: #{tpu_custom_call.1} parent=1 // pred_region
      %35 = dma.done [#allocation4], 128
    $region25: #{tpu_custom_call.1} parent=1 // pred_fallthru
      _
    %v36 = vld [vmem:[%s0] sm:$0xff]
    %v37 = vld [vmem:[%s0 + $0x8] sm:$0xff]
    %v38 = vld [vmem:[%s0 + $0x10] sm:$0xff]
    %v39 = vld [vmem:[%s0 + $0x18] sm:$0xff]
    %v40 = vld [vmem:[%s0 + $0x20] sm:$0xff]
    %v41 = vld [vmem:[%s0 + $0x28] sm:$0xff]
    %v42 = vld [vmem:[%s0 + $0x30] sm:$0xff]
    %v43 = vld [vmem:[%s0 + $0x38] sm:$0xff]
    %v44 = vld [vmem:[%s0 + $0x40] sm:$0xff]
    %v45 = vld [vmem:[%s0 + $0x48] sm:$0xff]
    %v46 = vld [vmem:[%s0 + $0x50] sm:$0xff]
    %v47 = vld [vmem:[%s0 + $0x58] sm:$0xff]
    %v48 = vld [vmem:[%s0 + $0x60] sm:$0xff]
    %v49 = vld [vmem:[%s0 + $0x68] sm:$0xff]
    %v50 = vld [vmem:[%s0 + $0x70] sm:$0xff]
    %v51 = vld [vmem:[%s0 + $0x78] sm:$0xff]
    %v52 = vld [vmem:[#allocation3] sm:$0x1]
    %v53 = vld [vmem:[#allocation3 + $0x1] sm:$0x1]
    %v54 = vld [vmem:[#allocation3 + $0x2] sm:$0x1]
    %v55 = vld [vmem:[#allocation3 + $0x3] sm:$0x1]
    %v56 = vld [vmem:[#allocation3 + $0x4] sm:$0x1]
    %v57 = vld [vmem:[#allocation3 + $0x5] sm:$0x1]
    %v58 = vld [vmem:[#allocation3 + $0x6] sm:$0x1]
    %v59 = vld [vmem:[%s1] sm:$0xff]
    %v60 = vld [vmem:[%s1 + $0x8] sm:$0xff]
    %v61 = vld [vmem:[%s1 + $0x10] sm:$0xff]
    %v62 = vld [vmem:[%s1 + $0x18] sm:$0xff]
    %v63 = vperm.slane %v52, 0
    %vm64 = vcmask 261120
    %v66 = vsel %vm64, %v36, 0
    %v69 = vsel %vm64, %v37, 0
    %v72 = vsel %vm64, %v38, 0
    %v75 = vsel %vm64, %v39, 0
    %v78 = vsel %vm64, %v40, 0
    %v81 = vsel %vm64, %v41, 0
    %v84 = vsel %vm64, %v42, 0
    %v87 = vsel %vm64, %v43, 0
    %v90 = vsel %vm64, %v44, 0
    %v93 = vsel %vm64, %v45, 0
    %v96 = vsel %vm64, %v46, 0
    %v99 = vsel %vm64, %v47, 0
    %v102 = vsel %vm64, %v48, 0
    %v105 = vsel %vm64, %v49, 0
    %v108 = vsel %vm64, %v50, 0
    %v111 = vsel %vm64, %v51, 0
    %113 = vmatpush.msra.mxu0 0.0
    %114 = vmatpush.msra.mxu0 0.0
    %115 = vmatpush.msra.mxu0 0.0
    %116 = vmatpush.msra.mxu0 0.0
    %117 = vmatpush.msra.mxu0 0.0
    %118 = vmatpush.msra.mxu0 0.0
    %119 = vmatpush.msra.mxu0 0.0
    %120 = vmatpush.msra.mxu0 0.0
    %121 = vmatpush.msra.mxu0 0.0
    %122 = vmatpush.msra.mxu0 0.0
    %123 = vmatpush.msra.mxu0 0.0
    %124 = vmatpush.msra.mxu0 0.0
    %125 = vmatpush.msra.mxu0 %v62
    %126 = vmatpush.msra.mxu0 %v61
    %127 = vmatpush.msra.mxu0 %v60
    %128 = vmatpush.msra.mxu0 %v59
    %129 = vmatmul.f32.gmra.mxu0 %v66
    %v130 = vpop.f32.mrf.mxu0
    %v131 = vadd.f32 %v63, %v130
    %132 = vmatmul.f32.gmra.mxu0 %v69
    %v133 = vpop.f32.mrf.mxu0
    %v134 = vadd.f32 %v63, %v133
    %135 = vmatmul.f32.gmra.mxu0 %v72
    %v136 = vpop.f32.mrf.mxu0
    %v137 = vadd.f32 %v63, %v136
    %138 = vmatmul.f32.gmra.mxu0 %v75
    %v139 = vpop.f32.mrf.mxu0
    %v140 = vadd.f32 %v63, %v139
    %141 = vmatmul.f32.gmra.mxu0 %v78
    %v142 = vpop.f32.mrf.mxu0
    %v143 = vadd.f32 %v63, %v142
    %144 = vmatmul.f32.gmra.mxu0 %v81
    %v145 = vpop.f32.mrf.mxu0
    %v146 = vadd.f32 %v63, %v145
    %147 = vmatmul.f32.gmra.mxu0 %v84
    %v148 = vpop.f32.mrf.mxu0
    %v149 = vadd.f32 %v63, %v148
    %150 = vmatmul.f32.gmra.mxu0 %v87
    %v151 = vpop.f32.mrf.mxu0
    %v152 = vadd.f32 %v63, %v151
    %153 = vmatmul.f32.gmra.mxu0 %v90
    %v154 = vpop.f32.mrf.mxu0
    %v155 = vadd.f32 %v63, %v154
    %156 = vmatmul.f32.gmra.mxu0 %v93
    %v157 = vpop.f32.mrf.mxu0
    %v158 = vadd.f32 %v63, %v157
    %159 = vmatmul.f32.gmra.mxu0 %v96
    %v160 = vpop.f32.mrf.mxu0
    %v161 = vadd.f32 %v63, %v160
    %162 = vmatmul.f32.gmra.mxu0 %v99
    %v163 = vpop.f32.mrf.mxu0
    %v164 = vadd.f32 %v63, %v163
    %165 = vmatmul.f32.gmra.mxu0 %v102
    %v166 = vpop.f32.mrf.mxu0
    %v167 = vadd.f32 %v63, %v166
    %168 = vmatmul.f32.gmra.mxu0 %v105
    %v169 = vpop.f32.mrf.mxu0
    %v170 = vadd.f32 %v63, %v169
    %171 = vmatmul.f32.gmra.mxu0 %v108
    %v172 = vpop.f32.mrf.mxu0
    %v173 = vadd.f32 %v63, %v172
    %174 = vmatmul.f32.gmra.mxu0 %v111
    %v175 = vpop.f32.mrf.mxu0
    %v176 = vadd.f32 %v63, %v175
    %177 = vdwg.mxu0
    %v178 = vmax.f32 %v131, 0.0
    %v179 = vmax.f32 %v134, 0.0
    %v180 = vmax.f32 %v137, 0.0
    %v181 = vmax.f32 %v140, 0.0
    %v182 = vmax.f32 %v143, 0.0
    %v183 = vmax.f32 %v146, 0.0
    %v184 = vmax.f32 %v149, 0.0
    %v185 = vmax.f32 %v152, 0.0
    %v186 = vmax.f32 %v155, 0.0
    %v187 = vmax.f32 %v158, 0.0
    %v188 = vmax.f32 %v161, 0.0
    %v189 = vmax.f32 %v164, 0.0
    %v190 = vmax.f32 %v167, 0.0
    %v191 = vmax.f32 %v170, 0.0
    %v192 = vmax.f32 %v173, 0.0
    %v193 = vmax.f32 %v176, 0.0
    %v194 = vadd.f32 %v178, %v179
    %v195 = vadd.f32 %v194, %v180
    %v196 = vadd.f32 %v195, %v181
    %v197 = vadd.f32 %v196, %v182
    %v198 = vadd.f32 %v197, %v183
    %v199 = vadd.f32 %v198, %v184
    %v200 = vadd.f32 %v199, %v185
    %v201 = vadd.f32 %v200, %v186
    %v202 = vadd.f32 %v201, %v187
    %v203 = vadd.f32 %v202, %v188
    %v204 = vadd.f32 %v203, %v189
    %v205 = vadd.f32 %v204, %v190
    %v206 = vadd.f32 %v205, %v191
    %v207 = vadd.f32 %v206, %v192
    %v208 = vadd.f32 %v207, %v193
    %v209 = vrot.slane %v208, 4
    %v210 = vadd.f32 %v208, %v209
    %v211 = vrot.slane %v210, 2
    %v212 = vadd.f32 %v210, %v211
    %v213 = vrot.slane %v212, 1
    %v214 = vadd.f32 %v212, %v213
    %v215 = vmul.f32 %v214, 0.0078125
    %v216 = vmul.f32 %v178, %v178
    %v217 = vmul.f32 %v179, %v179
    %v218 = vmul.f32 %v180, %v180
    %v219 = vmul.f32 %v181, %v181
    %v220 = vmul.f32 %v182, %v182
    %v221 = vmul.f32 %v183, %v183
    %v222 = vmul.f32 %v184, %v184
    %v223 = vmul.f32 %v185, %v185
    %v224 = vmul.f32 %v186, %v186
    %v225 = vmul.f32 %v187, %v187
    %v226 = vmul.f32 %v188, %v188
    %v227 = vmul.f32 %v189, %v189
    %v228 = vmul.f32 %v190, %v190
    %v229 = vmul.f32 %v191, %v191
    %v230 = vmul.f32 %v192, %v192
    %v231 = vmul.f32 %v193, %v193
    %v232 = vadd.f32 %v216, %v217
    %v233 = vadd.f32 %v232, %v218
    %v234 = vadd.f32 %v233, %v219
    %v235 = vadd.f32 %v234, %v220
    %v236 = vadd.f32 %v235, %v221
    %v237 = vadd.f32 %v236, %v222
    %v238 = vadd.f32 %v237, %v223
    %v239 = vadd.f32 %v238, %v224
    %v240 = vadd.f32 %v239, %v225
    %v241 = vadd.f32 %v240, %v226
    %v242 = vadd.f32 %v241, %v227
    %v243 = vadd.f32 %v242, %v228
    %v244 = vadd.f32 %v243, %v229
    %v245 = vadd.f32 %v244, %v230
    %v246 = vadd.f32 %v245, %v231
    %v247 = vrot.slane %v246, 4
    %v248 = vadd.f32 %v246, %v247
    %v249 = vrot.slane %v248, 2
    %v250 = vadd.f32 %v248, %v249
    %v251 = vrot.slane %v250, 1
    %v252 = vadd.f32 %v250, %v251
    %v253 = vmul.f32 %v252, 0.0078125
    %v254 = vmul.f32 %v215, %v215
    %v255 = vsub.f32 %v253, %v254
    %v256 = vmax.f32 %v255, 0.0
    %v257 = vadd.f32 %v256, 1e-05
    %v258 = vrsqrt.pop %v257
    %v259 = vmul.f32 %v258, %v257
    %v260 = vmul.f32 %v259, %v258
    %v261 = vmul.f32 0.5, %v260
    %v262 = vsub.f32 1.5, %v261
    %v263 = vmul.f32 %v258, %v262
    %vm264 = vweird.f32 %v257
    %vm265 = vweird.f32 %v258
    %vm266 = vmor %vm264, %vm265
    %v267 = vsel %vm266, %v258, %v263
    %v268 = vmul.f32 %v53, %v267
    %v269 = vmul.f32 %v215, %v268
    %v270 = vsub.f32 %v54, %v269
    %v271 = vld [vmem:[%s2] sm:$0xff]
    %v272 = vld [vmem:[%s2 + $0x8] sm:$0xff]
    %v273 = vld [vmem:[%s2 + $0x10] sm:$0xff]
    %v274 = vld [vmem:[%s2 + $0x18] sm:$0xff]
    %v275 = vld [vmem:[%s2 + $0x20] sm:$0xff]
    %v276 = vld [vmem:[%s2 + $0x28] sm:$0xff]
    %v277 = vld [vmem:[%s2 + $0x30] sm:$0xff]
    %v278 = vld [vmem:[%s2 + $0x38] sm:$0xff]
    %v279 = vld [vmem:[%s2 + $0x40] sm:$0xff]
    %v280 = vld [vmem:[%s2 + $0x48] sm:$0xff]
    %v281 = vld [vmem:[%s2 + $0x50] sm:$0xff]
    %v282 = vld [vmem:[%s2 + $0x58] sm:$0xff]
    %v283 = vld [vmem:[%s2 + $0x60] sm:$0xff]
    %v284 = vld [vmem:[%s2 + $0x68] sm:$0xff]
    %v285 = vld [vmem:[%s2 + $0x70] sm:$0xff]
    %v286 = vld [vmem:[%s2 + $0x78] sm:$0xff]
    %v287 = vperm.slane %v268, 0
    %v288 = vmul.f32 %v271, %v287
    %v289 = vmul.f32 %v272, %v287
    %v290 = vmul.f32 %v273, %v287
    %v291 = vmul.f32 %v274, %v287
    %v292 = vmul.f32 %v275, %v287
    %v293 = vmul.f32 %v276, %v287
    %v294 = vmul.f32 %v277, %v287
    %v295 = vmul.f32 %v278, %v287
    %v296 = vmul.f32 %v279, %v287
    %v297 = vmul.f32 %v280, %v287
    %v298 = vmul.f32 %v281, %v287
    %v299 = vmul.f32 %v282, %v287
    %v300 = vmul.f32 %v283, %v287
    %v301 = vmul.f32 %v284, %v287
    %v302 = vmul.f32 %v285, %v287
    %v303 = vmul.f32 %v286, %v287
    %304 = vmatpush.xpose.msra.mxu0 %v286
    %305 = vmatpush.xpose.msra.mxu0 %v285
    %306 = vmatpush.xpose.msra.mxu0 %v284
    %307 = vmatpush.xpose.msra.mxu0 %v283
    %308 = vmatpush.xpose.msra.mxu0 %v282
    %309 = vmatpush.xpose.msra.mxu0 %v281
    %310 = vmatpush.xpose.msra.mxu0 %v280
    %311 = vmatpush.xpose.msra.mxu0 %v279
    %312 = vmatpush.xpose.msra.mxu0 %v278
    %313 = vmatpush.xpose.msra.mxu0 %v277
    %314 = vmatpush.xpose.msra.mxu0 %v276
    %315 = vmatpush.xpose.msra.mxu0 %v275
    %316 = vmatpush.xpose.msra.mxu0 %v274
    %317 = vmatpush.xpose.msra.mxu0 %v273
    %318 = vmatpush.xpose.msra.mxu0 %v272
    %319 = vmatpush.xpose.msra.mxu0 %v271
    %320 = vmatmul.f32.gmra.mxu0 %v270
    %v321 = vpop.f32.mrf.mxu0
    %v322 = vadd.f32 %v55, %v321
    %323 = vdwg.mxu0
    %v324 = vperm.slane %v322, 0
    %325 = vmatpush.xpose.msra.mxu0 %v303
    %326 = vmatpush.xpose.msra.mxu0 %v302
    %327 = vmatpush.xpose.msra.mxu0 %v301
    %328 = vmatpush.xpose.msra.mxu0 %v300
    %329 = vmatpush.xpose.msra.mxu0 %v299
    %330 = vmatpush.xpose.msra.mxu0 %v298
    %331 = vmatpush.xpose.msra.mxu0 %v297
    %332 = vmatpush.xpose.msra.mxu0 %v296
    %333 = vmatpush.xpose.msra.mxu0 %v295
    %334 = vmatpush.xpose.msra.mxu0 %v294
    %335 = vmatpush.xpose.msra.mxu0 %v293
    %336 = vmatpush.xpose.msra.mxu0 %v292
    %337 = vmatpush.xpose.msra.mxu0 %v291
    %338 = vmatpush.xpose.msra.mxu0 %v290
    %339 = vmatpush.xpose.msra.mxu0 %v289
    %340 = vmatpush.xpose.msra.mxu0 %v288
    %341 = vmatmul.f32.gmra.mxu0 %v178
    %v342 = vpop.f32.mrf.mxu0
    %v343 = vadd.f32 %v324, %v342
    %344 = vmatmul.f32.gmra.mxu0 %v179
    %v345 = vpop.f32.mrf.mxu0
    %v346 = vadd.f32 %v324, %v345
    %347 = vmatmul.f32.gmra.mxu0 %v180
    %v348 = vpop.f32.mrf.mxu0
    %v349 = vadd.f32 %v324, %v348
    %350 = vmatmul.f32.gmra.mxu0 %v181
    %v351 = vpop.f32.mrf.mxu0
    %v352 = vadd.f32 %v324, %v351
    %353 = vmatmul.f32.gmra.mxu0 %v182
    %v354 = vpop.f32.mrf.mxu0
    %v355 = vadd.f32 %v324, %v354
    %356 = vmatmul.f32.gmra.mxu0 %v183
    %v357 = vpop.f32.mrf.mxu0
    %v358 = vadd.f32 %v324, %v357
    %359 = vmatmul.f32.gmra.mxu0 %v184
    %v360 = vpop.f32.mrf.mxu0
    %v361 = vadd.f32 %v324, %v360
    %362 = vmatmul.f32.gmra.mxu0 %v185
    %v363 = vpop.f32.mrf.mxu0
    %v364 = vadd.f32 %v324, %v363
    %365 = vmatmul.f32.gmra.mxu0 %v186
    %v366 = vpop.f32.mrf.mxu0
    %v367 = vadd.f32 %v324, %v366
    %368 = vmatmul.f32.gmra.mxu0 %v187
    %v369 = vpop.f32.mrf.mxu0
    %v370 = vadd.f32 %v324, %v369
    %371 = vmatmul.f32.gmra.mxu0 %v188
    %v372 = vpop.f32.mrf.mxu0
    %v373 = vadd.f32 %v324, %v372
    %374 = vmatmul.f32.gmra.mxu0 %v189
    %v375 = vpop.f32.mrf.mxu0
    %v376 = vadd.f32 %v324, %v375
    %377 = vmatmul.f32.gmra.mxu0 %v190
    %v378 = vpop.f32.mrf.mxu0
    %v379 = vadd.f32 %v324, %v378
    %380 = vmatmul.f32.gmra.mxu0 %v191
    %v381 = vpop.f32.mrf.mxu0
    %v382 = vadd.f32 %v324, %v381
    %383 = vmatmul.f32.gmra.mxu0 %v192
    %v384 = vpop.f32.mrf.mxu0
    %v385 = vadd.f32 %v324, %v384
    %386 = vmatmul.f32.gmra.mxu0 %v193
    %v387 = vpop.f32.mrf.mxu0
    %v388 = vadd.f32 %v324, %v387
    %389 = vdwg.mxu0
    %v390 = vmax.f32 %v343, 0.0
    %v391 = vmax.f32 %v346, 0.0
    %v392 = vmax.f32 %v349, 0.0
    %v393 = vmax.f32 %v352, 0.0
    %v394 = vmax.f32 %v355, 0.0
    %v395 = vmax.f32 %v358, 0.0
    %v396 = vmax.f32 %v361, 0.0
    %v397 = vmax.f32 %v364, 0.0
    %v398 = vmax.f32 %v367, 0.0
    %v399 = vmax.f32 %v370, 0.0
    %v400 = vmax.f32 %v373, 0.0
    %v401 = vmax.f32 %v376, 0.0
    %v402 = vmax.f32 %v379, 0.0
    %v403 = vmax.f32 %v382, 0.0
    %v404 = vmax.f32 %v385, 0.0
    %v405 = vmax.f32 %v388, 0.0
    %v406 = vadd.f32 %v390, %v391
    %v407 = vadd.f32 %v406, %v392
    %v408 = vadd.f32 %v407, %v393
    %v409 = vadd.f32 %v408, %v394
    %v410 = vadd.f32 %v409, %v395
    %v411 = vadd.f32 %v410, %v396
    %v412 = vadd.f32 %v411, %v397
    %v413 = vadd.f32 %v412, %v398
    %v414 = vadd.f32 %v413, %v399
    %v415 = vadd.f32 %v414, %v400
    %v416 = vadd.f32 %v415, %v401
    %v417 = vadd.f32 %v416, %v402
    %v418 = vadd.f32 %v417, %v403
    %v419 = vadd.f32 %v418, %v404
    %v420 = vadd.f32 %v419, %v405
    %v421 = vrot.slane %v420, 4
    %v422 = vadd.f32 %v420, %v421
    %v423 = vrot.slane %v422, 2
    %v424 = vadd.f32 %v422, %v423
    %v425 = vrot.slane %v424, 1
    %v426 = vadd.f32 %v424, %v425
    %v427 = vmul.f32 %v426, 0.0078125
    %v428 = vmul.f32 %v390, %v390
    %v429 = vmul.f32 %v391, %v391
    %v430 = vmul.f32 %v392, %v392
    %v431 = vmul.f32 %v393, %v393
    %v432 = vmul.f32 %v394, %v394
    %v433 = vmul.f32 %v395, %v395
    %v434 = vmul.f32 %v396, %v396
    %v435 = vmul.f32 %v397, %v397
    %v436 = vmul.f32 %v398, %v398
    %v437 = vmul.f32 %v399, %v399
    %v438 = vmul.f32 %v400, %v400
    %v439 = vmul.f32 %v401, %v401
    %v440 = vmul.f32 %v402, %v402
    %v441 = vmul.f32 %v403, %v403
    %v442 = vmul.f32 %v404, %v404
    %v443 = vmul.f32 %v405, %v405
    %v444 = vadd.f32 %v428, %v429
    %v445 = vadd.f32 %v444, %v430
    %v446 = vadd.f32 %v445, %v431
    %v447 = vadd.f32 %v446, %v432
    %v448 = vadd.f32 %v447, %v433
    %v449 = vadd.f32 %v448, %v434
    %v450 = vadd.f32 %v449, %v435
    %v451 = vadd.f32 %v450, %v436
    %v452 = vadd.f32 %v451, %v437
    %v453 = vadd.f32 %v452, %v438
    %v454 = vadd.f32 %v453, %v439
    %v455 = vadd.f32 %v454, %v440
    %v456 = vadd.f32 %v455, %v441
    %v457 = vadd.f32 %v456, %v442
    %v458 = vadd.f32 %v457, %v443
    %v459 = vrot.slane %v458, 4
    %v460 = vadd.f32 %v458, %v459
    %v461 = vrot.slane %v460, 2
    %v462 = vadd.f32 %v460, %v461
    %v463 = vrot.slane %v462, 1
    %v464 = vadd.f32 %v462, %v463
    %v465 = vmul.f32 %v464, 0.0078125
    %v466 = vmul.f32 %v427, %v427
    %v467 = vsub.f32 %v465, %v466
    %v468 = vmax.f32 %v467, 0.0
    %v469 = vadd.f32 %v468, 1e-05
    %v470 = vrsqrt.pop %v469
    %v471 = vmul.f32 %v470, %v469
    %v472 = vmul.f32 %v471, %v470
    %v473 = vmul.f32 0.5, %v472
    %v474 = vsub.f32 1.5, %v473
    %v475 = vmul.f32 %v470, %v474
    %vm476 = vweird.f32 %v469
    %vm477 = vweird.f32 %v470
    %vm478 = vmor %vm476, %vm477
    %v479 = vsel %vm478, %v470, %v475
    %v480 = vmul.f32 %v56, %v479
    %v481 = vmul.f32 %v427, %v480
    %v482 = vsub.f32 %v57, %v481
    %v483 = vmul.f32 %v58, %v480
    %v484 = vmul.f32 %v58, %v482
    %vm485 = vcmask 1040384
    %v486 = vsel %vm485, %v484, 0.0
    %487 = vadd.xlane.f32.xlu0 %v486
    %v488 = vpop.xlane.xlu0 %487
    %v489 = vrot.slane %v488, 4
    %v490 = vadd.f32 %v488, %v489
    %v491 = vrot.slane %v490, 2
    %v492 = vadd.f32 %v490, %v491
    %v493 = vrot.slane %v492, 1
    %v494 = vadd.f32 %v492, %v493
    %s495 = vtos %v494
    %s496 = sld [smem:[#allocation2]]
    %s497 = sadd.f32 %s495, %s496
    %v498 = vstv %s497
    %499 = vmatpush.xpose.msra.mxu0 %v405
    %500 = vmatpush.xpose.msra.mxu0 %v404
    %501 = vmatpush.xpose.msra.mxu0 %v403
    %502 = vmatpush.xpose.msra.mxu0 %v402
    %503 = vmatpush.xpose.msra.mxu0 %v401
    %504 = vmatpush.xpose.msra.mxu0 %v400
    %505 = vmatpush.xpose.msra.mxu0 %v399
    %506 = vmatpush.xpose.msra.mxu0 %v398
    %507 = vmatpush.xpose.msra.mxu0 %v397
    %508 = vmatpush.xpose.msra.mxu0 %v396
    %509 = vmatpush.xpose.msra.mxu0 %v395
    %510 = vmatpush.xpose.msra.mxu0 %v394
    %511 = vmatpush.xpose.msra.mxu0 %v393
    %512 = vmatpush.xpose.msra.mxu0 %v392
    %513 = vmatpush.xpose.msra.mxu0 %v391
    %514 = vmatpush.xpose.msra.mxu0 %v390
    %515 = vmatmul.f32.gmra.mxu0 %v483
    %v516 = vpop.f32.mrf.mxu0
    %v517 = vadd.f32 %v498, %v516
    %518 = vdwg.mxu0
    %519 = vst [vmem:[#allocation6] sm:$0x1] %v517
    // Predicated region
    $region26: #{tpu_custom_call.1} parent=1 // pred_check
      _
    $region27: #{tpu_custom_call.1} parent=1 // pred_check_branch
      %521 = sbr.rel (0) target = $region29
    $region28: #{tpu_custom_call.1} parent=1 // pred_region
      %523 = vsyncadd [#allocation5], 0
      %s525 = sshll.u32 [#allocation6], 4
      %s526 = int_to_ptr.vmem [resolvable:$true] %s525
      %s527 = sshll.u32 %s5, 4
      %s528 = int_to_ptr.hbm [resolvable:$true] %s527
      %530 = dma.vmem_to_hbm [thread:$0]  %s526, 16, %s528, [#allocation5]
    $region29: #{tpu_custom_call.1} parent=1 // pred_fallthru
      _
    // Predicated region
    $region30: #{tpu_custom_call.1} parent=1 // pred_check
      _
    $region31: #{tpu_custom_call.1} parent=1 // pred_check_branch
      %532 = sbr.rel (0) target = $region33
    $region32: #{tpu_custom_call.1} parent=1 // pred_region
      %534 = dma.done [#allocation5], 16
    $region33: #{tpu_custom_call.1} parent=1 // pred_fallthru
      _
    %535 = vsyncpa [#allocation4], 1
    %536 = vsyncpa [#allocation5], 1

</llo_original>
